<compile_context>
chip_gen: v6e
topology: v6e:2x2x1
jax: 0.10.0
libtpu: 0.0.40
codegen_flags: <defaults>
</compile_context>

<pallas_src>
import functools

import jax
import jax.numpy as jnp
from jax.experimental import pallas as pl
from jax.experimental.pallas import tpu as pltpu


def _pos_enc_kernel(scale_ref, sel_ref, x_ref, o_ref, *, num_harmonic: int):
    """scale_ref/sel_ref: (1, 2H*D) resident constants; x_ref: (tn, D); o_ref: (tn, D*(1+2H))."""
    x = x_ref[...]                                                  # (tn, D)

    # Lane-replicate x across all 2H harmonic slots -> (tn, 2H*D), fully lane-dense.
    rep = jnp.concatenate([x] * (2 * num_harmonic), axis=-1)

    # Pre-interleaved scales: slot 2i (sin) and slot 2i+1 (cos) both hold 2^i.
    z = rep.astype(jnp.float32) * scale_ref[...]                    # (tn, 2H*D)

    # Exact sin / cos, selected per slot (sel==1 -> sin slot, sel==0 -> cos slot).
    trig = jnp.where(sel_ref[...] != 0.0, jnp.sin(z), jnp.cos(z))   # (tn, 2H*D)

    # Single dense, lane-aligned store: [x | sin/cos interleaved].
    o_ref[...] = jnp.concatenate(
        [x.astype(o_ref.dtype), trig.astype(o_ref.dtype)], axis=-1
    )


def positional_encoding(x: jax.Array, num_harmonic: int = 60, *, row_tile: int = 512) -> jax.Array:
    """Pallas equivalent of PositionalEncoding.forward."""
    if num_harmonic <= 0:
        return x

    orig_shape = x.shape
    d = orig_shape[-1]
    n = 1
    for s in orig_shape[:-1]:
        n *= s
    n = max(int(n), 1)
    h = int(num_harmonic)
    d_out = d * (1 + 2 * h)
    x2d = x.reshape(n, d)

    # ---- Resident constants (built once in the wrapper, index_map -> (0, 0)) ----
    pow2 = 2.0 ** jnp.arange(h, dtype=jnp.float32)                    # (H,)
    scale_row = jnp.repeat(pow2, 2 * d).reshape(1, 2 * h * d)         # [2^i]*2D per harmonic
    sel_unit = jnp.concatenate(
        [jnp.ones((d,), jnp.float32), jnp.zeros((d,), jnp.float32)])  # sin slot | cos slot
    sel_row = jnp.tile(sel_unit, h).reshape(1, 2 * h * d)

    # ---- Row-tile selection: as big as fits a conservative VMEM budget ----
    itemsize = jnp.dtype(x.dtype).itemsize
    vmem_budget = 28 * 1024 * 1024   # keep well under v7x's 64 MiB physical VMEM
    per_row = 2 * (d + d_out) * itemsize + 3 * (2 * h * d) * 4        # dbl-buffered I/O + f32 temps
    cap = max(8, int(vmem_budget // max(per_row, 1)) // 8 * 8)
    tn = max(8, (min(int(row_tile), cap) // 8) * 8)

    if n <= tn:
        tn = n                       # single block; block dims == full array dims is allowed
        n_pad = n
        x_in = x2d
    else:
        n_pad = ((n + tn - 1) // tn) * tn
        x_in = jnp.pad(x2d, ((0, n_pad - n), (0, 0))) if n_pad != n else x2d
    grid = (n_pad // tn,)

    kernel = functools.partial(_pos_enc_kernel, num_harmonic=h)

    cost = pl.CostEstimate(
        flops=3 * n * 2 * h * d,
        transcendentals=2 * n * h * d,
        bytes_accessed=itemsize * n * (d + d_out) + 2 * 4 * 2 * h * d,
    )

    out2d = pl.pallas_call(
        kernel,
        out_shape=jax.ShapeDtypeStruct((n_pad, d_out), x.dtype),
        grid_spec=pltpu.PrefetchScalarGridSpec(
            num_scalar_prefetch=0,
            grid=grid,
            in_specs=[
                pl.BlockSpec((1, 2 * h * d), lambda i: (0, 0)),   # scales: VMEM-resident
                pl.BlockSpec((1, 2 * h * d), lambda i: (0, 0)),   # sin/cos selector: resident
                pl.BlockSpec((tn, d), lambda i: (i, 0)),
            ],
            out_specs=pl.BlockSpec((tn, d_out), lambda i: (i, 0)),
        ),
        compiler_params=pltpu.CompilerParams(
            dimension_semantics=("parallel",),
            vmem_limit_bytes=48 * 1024 * 1024,
        ),
        cost_estimate=cost,
    )(scale_row, sel_row, x_in)

    if n_pad != n:
        out2d = out2d[:n]
    return out2d.reshape(*orig_shape[:-1], d_out)


def positional_encoding_ref(x: jax.Array, num_harmonic: int = 60) -> jax.Array:
    """Pure-JAX reference matching the PyTorch module."""
    emb = [x]
    for i in range(num_harmonic):
        emb.append(jnp.sin(2.0 ** i * x))
        emb.append(jnp.cos(2.0 ** i * x))
    return jnp.concatenate(emb, axis=-1)


if __name__ == "__main__":
    key = jax.random.PRNGKey(0)
    # Small shapes consistent with the module: batch=2, seq=8, hidden=16.
    x = jax.random.normal(key, (2, 8, 16), dtype=jnp.float32)

    # NOTE: module default is 60; at H=60 f32 sin/cos of 2^59*x is dominated by
    # argument-reduction error in ANY implementation, so the self-test uses a small H.
    num_harmonic = 6

    out = positional_encoding(x, num_harmonic=num_harmonic)
    out = jax.block_until_ready(out)

    ref = positional_encoding_ref(x, num_harmonic=num_harmonic)

    assert out.shape == (2, 8, 16 * (1 + 2 * num_harmonic)), out.shape
    assert out.dtype == x.dtype
    assert jnp.allclose(out, ref, atol=1e-5, rtol=1e-5), "mismatch vs reference"

    print("KERNEL_OK")
</pallas_src>

<mosaic_0001>
module attributes {stable_mosaic.version = 11 : i64} {
  func.func @_pos_enc_kernel(%arg0: i32, %arg1: memref<1x192xf32, #tpu.memory_space<vmem>>, %arg2: memref<1x192xf32, #tpu.memory_space<vmem>>, %arg3: memref<16x16xf32, #tpu.memory_space<vmem>>, %arg4: memref<16x208xf32, #tpu.memory_space<vmem>>) attributes {dimension_semantics = [#tpu.dimension_semantics<parallel>], iteration_bounds = array<i64: 1>, scalar_prefetch = 0 : i64, scratch_operands = 0 : i64, tpu.core_type = #tpu.core_type<tc>, window_params = [{pipeline_mode = #tpu.pipeline_mode<synchronous>, transform_indices = @transform_0, window_bounds = array<i64: 1, 192>}, {pipeline_mode = #tpu.pipeline_mode<synchronous>, transform_indices = @transform_1, window_bounds = array<i64: 1, 192>}, {transform_indices = @transform_2, window_bounds = array<i64: 16, 16>}, {transform_indices = @transform_3, window_bounds = array<i64: 16, 208>}]} {
    %c0 = arith.constant 0 : index
    %c0_0 = arith.constant 0 : index
    %0 = vector.load %arg3[%c0, %c0_0] : memref<16x16xf32, #tpu.memory_space<vmem>>, vector<16x16xf32>
    %1 = tpu.concatenate %0, %0, %0, %0, %0, %0, %0, %0, %0, %0, %0, %0 in 1 : vector<16x16xf32>, vector<16x16xf32>, vector<16x16xf32>, vector<16x16xf32>, vector<16x16xf32>, vector<16x16xf32>, vector<16x16xf32>, vector<16x16xf32>, vector<16x16xf32>, vector<16x16xf32>, vector<16x16xf32>, vector<16x16xf32> -> vector<16x192xf32>
    %c0_1 = arith.constant 0 : index
    %c0_2 = arith.constant 0 : index
    %2 = vector.load %arg1[%c0_1, %c0_2] : memref<1x192xf32, #tpu.memory_space<vmem>>, vector<1x192xf32>
    %3 = vector.broadcast %2 : vector<1x192xf32> to vector<16x192xf32>
    %4 = arith.mulf %1, %3 : vector<16x192xf32>
    %c0_3 = arith.constant 0 : index
    %c0_4 = arith.constant 0 : index
    %5 = vector.load %arg2[%c0_3, %c0_4] : memref<1x192xf32, #tpu.memory_space<vmem>>, vector<1x192xf32>
    %cst = arith.constant 0.000000e+00 : f32
    %6 = vector.broadcast %cst : f32 to vector<1x192xf32>
    %7 = arith.cmpf one, %5, %6 : vector<1x192xf32>
    %8 = math.sin %4 : vector<16x192xf32>
    %9 = math.cos %4 : vector<16x192xf32>
    %10 = vector.shape_cast %7 : vector<1x192xi1> to vector<1x192xi1>
    %11 = vector.broadcast %10 : vector<1x192xi1> to vector<16x192xi1>
    %12 = arith.select %11, %8, %9 : vector<16x192xi1>, vector<16x192xf32>
    %13 = tpu.concatenate %0, %12 in 1 : vector<16x16xf32>, vector<16x192xf32> -> vector<16x208xf32>
    %c0_5 = arith.constant 0 : index
    %c0_6 = arith.constant 0 : index
    %14 = vector.load %arg4[%c0_5, %c0_6] : memref<16x208xf32, #tpu.memory_space<vmem>>, vector<16x208xf32>
    tpu.vector_store %arg4[%c0_5, %c0_6], %13 {strides = array<i32>} : memref<16x208xf32, #tpu.memory_space<vmem>>, vector<16x208xf32>,
    return
  }
  func.func @transform_0(%arg0: i32) -> (i32, i32) {
    %c0_i32 = arith.constant 0 : i32
    %c0_i32_0 = arith.constant 0 : i32
    %c0_i32_1 = arith.constant 0 : i32
    return %c0_i32, %c0_i32_0 : i32, i32
  }
  func.func @transform_1(%arg0: i32) -> (i32, i32) {
    %c0_i32 = arith.constant 0 : i32
    %c0_i32_0 = arith.constant 0 : i32
    %c0_i32_1 = arith.constant 0 : i32
    return %c0_i32, %c0_i32_0 : i32, i32
  }
  func.func @transform_2(%arg0: i32) -> (i32, i32) {
    %c0_i32 = arith.constant 0 : i32
    %c0_i32_0 = arith.constant 0 : i32
    return %arg0, %c0_i32 : i32, i32
  }
  func.func @transform_3(%arg0: i32) -> (i32, i32) {
    %c0_i32 = arith.constant 0 : i32
    %c0_i32_0 = arith.constant 0 : i32
    return %arg0, %c0_i32 : i32, i32
  }
}

</mosaic_0001>

<llo_original>
// kernel: tpu_custom_call.1
$region0: #{tpu_custom_call.1}
  #allocation0 [shape = 'u32[]', space=smem, size = 0x4, offset = 0x4, fixed_abs, tag = 'smem constant byte address 0x4 - core index']
  #allocation1 [shape = 'u32[144,128]{1,0:T(1,128)}', space=vmem, size = 0x12000, scoped, tag = 'internal scratch']
  %s0 = inlined_call_operand.hbm [shape: f32[1,192], index: 0, kind: input, shape index: {}]
  %s1 = inlined_call_operand.hbm [shape: f32[1,192], index: 1, kind: input, shape index: {}]
  %s2 = inlined_call_operand.hbm [shape: f32[16,16], index: 2, kind: input, shape index: {}]
  %s3 = inlined_call_operand.hbm [shape: f32[16,208], index: 3, kind: output, shape index: {}]
  %s4 = sld [smem:[#allocation0]]
  $region34: #{tpu_custom_call.1} parent=0
    _
  %s6 = ssub.s32 1, %s4
  %s7 = scalar_select 0, %s6, %s4
  $region1: #{tpu_custom_call.1} parent=0
    #allocation2 [shape = 'u8[1024]{0}', space=vmem, size = 0x400, scoped, tag = 'input window, operand 0, single buffered']
    #allocation3 [shape = 's32[1]{0}', space=sflag, size = 0x4, scoped, tag = 'scoped memory for tpu_custom_call.1']
    #allocation4 [shape = 's32[1]{0}', space=sflag, size = 0x4, scoped, tag = 'scoped memory for tpu_custom_call.1']
    #allocation5 [shape = 'u8[1024]{0}', space=vmem, size = 0x400, scoped, tag = 'input window, operand 1, single buffered']
    #allocation6 [shape = 's32[1]{0}', space=sflag, size = 0x4, scoped, tag = 'scoped memory for tpu_custom_call.1']
    #allocation7 [shape = 'u8[8192]{0}', space=vmem, size = 0x2000, scoped, tag = 'input window, operand 2, single buffered']
    #allocation8 [shape = 'u8[16384]{0}', space=vmem, size = 0x4000, scoped, tag = 'output window, operand 0, single buffered']
    %8 = vsyncpa [#allocation3], 0
    %9 = vsyncpa [#allocation6], 0
    %10 = vsyncpa [#allocation4], 0
    // Predicated region
    $region2: #{tpu_custom_call.1} parent=1 // pred_check
      _
    $region3: #{tpu_custom_call.1} parent=1 // pred_check_branch
      %12 = sbr.rel (0) target = $region5
    $region4: #{tpu_custom_call.1} parent=1 // pred_region
      %s14 = ssub.s32 32, 32
      %15 = vsyncadd [#allocation3], %s14
      %s17 = sshll.u32 [#allocation2], 4
      %s18 = int_to_ptr.vmem [resolvable:$true] %s17
      %20 = dma.hbm_to_vmem [thread:$0]  %s0, 32, %s18, [#allocation3]
    $region5: #{tpu_custom_call.1} parent=1 // pred_fallthru
      _
    // Predicated region
    $region6: #{tpu_custom_call.1} parent=1 // pred_check
      _
    $region7: #{tpu_custom_call.1} parent=1 // pred_check_branch
      %22 = sbr.rel (0) target = $region9
    $region8: #{tpu_custom_call.1} parent=1 // pred_region
      %s24 = ssub.s32 32, 32
      %25 = vsyncadd [#allocation6], %s24
      %s27 = sshll.u32 [#allocation5], 4
      %s28 = int_to_ptr.vmem [resolvable:$true] %s27
      %30 = dma.hbm_to_vmem [thread:$0]  %s1, 32, %s28, [#allocation6]
    $region9: #{tpu_custom_call.1} parent=1 // pred_fallthru
      _
    // Predicated region
    $region10: #{tpu_custom_call.1} parent=1 // pred_check
      _
    $region11: #{tpu_custom_call.1} parent=1 // pred_check_branch
      %32 = sbr.rel (0) target = $region13
    $region12: #{tpu_custom_call.1} parent=1 // pred_region
      %s34 = ssub.s32 256, 256
      %35 = vsyncadd [#allocation6], %s34
      %s36 = sshll.u32 [#allocation7], 4
      %s37 = int_to_ptr.vmem [resolvable:$true] %s36
      %42 = dma.hbm_to_vmem [thread:$0]  %s2, 256, %s37, [#allocation6], 128, 128, 8
    $region13: #{tpu_custom_call.1} parent=1 // pred_fallthru
      _
    // Predicated region
    $region14: #{tpu_custom_call.1} parent=1 // pred_check
      _
    $region15: #{tpu_custom_call.1} parent=1 // pred_check_branch
      %44 = sbr.rel (0) target = $region17
    $region16: #{tpu_custom_call.1} parent=1 // pred_region
      %45 = dma.done [#allocation3], 32
    $region17: #{tpu_custom_call.1} parent=1 // pred_fallthru
      _
    // Predicated region
    $region18: #{tpu_custom_call.1} parent=1 // pred_check
      _
    $region19: #{tpu_custom_call.1} parent=1 // pred_check_branch
      %47 = sbr.rel (0) target = $region21
    $region20: #{tpu_custom_call.1} parent=1 // pred_region
      %48 = dma.done [#allocation6], 32
    $region21: #{tpu_custom_call.1} parent=1 // pred_fallthru
      _
    // Predicated region
    $region22: #{tpu_custom_call.1} parent=1 // pred_check
      _
    $region23: #{tpu_custom_call.1} parent=1 // pred_check_branch
      %50 = sbr.rel (0) target = $region25
    $region24: #{tpu_custom_call.1} parent=1 // pred_region
      %51 = dma.done [#allocation6], 256
    $region25: #{tpu_custom_call.1} parent=1 // pred_fallthru
      _
    %v52 = vld [vmem:[#allocation7] sm:$0xff]
    %v53 = vld [vmem:[#allocation7 + $0x8] sm:$0xff]
    %56 = vrot.lane.b32.xlu0 %v52, 16
    %v57 = vpop.permute.xlu0 %56
    %58 = vrot.lane.b32.xlu0 %v53, 16
    %v59 = vpop.permute.xlu0 %58
    %62 = vrot.lane.b32.xlu0 %v52, 32
    %v63 = vpop.permute.xlu0 %62
    %64 = vrot.lane.b32.xlu0 %v53, 32
    %v65 = vpop.permute.xlu0 %64
    %68 = vrot.lane.b32.xlu0 %v52, 48
    %v69 = vpop.permute.xlu0 %68
    %70 = vrot.lane.b32.xlu0 %v53, 48
    %v71 = vpop.permute.xlu0 %70
    %74 = vrot.lane.b32.xlu0 %v52, 64
    %v75 = vpop.permute.xlu0 %74
    %76 = vrot.lane.b32.xlu0 %v53, 64
    %v77 = vpop.permute.xlu0 %76
    %80 = vrot.lane.b32.xlu0 %v52, 80
    %v81 = vpop.permute.xlu0 %80
    %82 = vrot.lane.b32.xlu0 %v53, 80
    %v83 = vpop.permute.xlu0 %82
    %86 = vrot.lane.b32.xlu0 %v52, 96
    %v87 = vpop.permute.xlu0 %86
    %88 = vrot.lane.b32.xlu0 %v53, 96
    %v89 = vpop.permute.xlu0 %88
    %92 = vrot.lane.b32.xlu0 %v52, 112
    %v93 = vpop.permute.xlu0 %92
    %94 = vrot.lane.b32.xlu0 %v53, 112
    %v95 = vpop.permute.xlu0 %94
    %vm98 = vcmask 130048
    %v99 = vsel %vm98, %v52, %v57
    %v100 = vsel %vm98, %v53, %v59
    %vm101 = vcmask 261120
    %v102 = vsel %vm101, %v99, %v63
    %v103 = vsel %vm101, %v100, %v65
    %vm104 = vcmask 392192
    %v105 = vsel %vm104, %v102, %v69
    %v106 = vsel %vm104, %v103, %v71
    %vm107 = vcmask 523264
    %v108 = vsel %vm107, %v105, %v75
    %v109 = vsel %vm107, %v106, %v77
    %vm110 = vcmask 654336
    %v111 = vsel %vm110, %v108, %v81
    %v112 = vsel %vm110, %v109, %v83
    %vm113 = vcmask 785408
    %v114 = vsel %vm113, %v111, %v87
    %v115 = vsel %vm113, %v112, %v89
    %vm116 = vcmask 916480
    %v117 = vsel %vm116, %v114, %v93
    %v118 = vsel %vm116, %v115, %v95
    %v119 = vld [vmem:[#allocation2] sm:$0x3]
    %v121 = vlaneseq
    %v122 = vshrl.u32 %v121, 7
    %v123 = vsub.s32 0, %v122
    %v124 = vrot.slane %v119, %v123
    %v125 = vlaneseq
    %v126 = vshrl.u32 %v125, 7
    %v127 = vsub.s32 1, %v126
    %v128 = vrot.slane %v119, %v127
    %v131 = vmul.f32 %v117, %v124
    %v132 = vmul.f32 %v105, %v128
    %v133 = vmul.f32 %v118, %v124
    %v134 = vmul.f32 %v106, %v128
    %v135 = vld [vmem:[#allocation5] sm:$0x3]
    %vm136 = vcmp.ne.f32.partialorder %v135, 0.0
    %v137 = vand.u32 2147483647, %v131
    %vm138 = vcmp.le.f32.partialorder %v137, 0.7853982
    %vm139 = vcmp.lt.s32.totalorder %v131, 0
    %v140 = vand.u32 %v131, 2139095040
    %v141 = vshrl.u32 %v140, 23
    %v142 = vsub.s32 %v141, 127
    %v143 = vand.u32 2147483647, %v131
    %v144 = vand.u32 %v143, 8388607
    %v145 = vor.u32 %v144, 8388608
    %v146 = vsub.s32 0, %v145
    %v147 = vadd.s32 %v142, 1
    %vm148 = vcmp.gt.s32.totalorder %v147, 0
    %v149 = vsel %vm148, %v147, 0
    %v150 = vshrl.u32 %v149, 5
    %v151 = vand.u32 %v149, 31
    %v152 = vsub.s32 32, %v151
    %v153 = vshrl.u32 683565275, %v152
    %v154 = vshll.u32 683565275, %v151
    %v155 = vshrl.u32 2475754826, %v152
    %v156 = vor.u32 %v154, %v155
    %v157 = vshll.u32 2475754826, %v151
    %v158 = vshrl.u32 2131351028, %v152
    %v159 = vor.u32 %v157, %v158
    %v160 = vshll.u32 2131351028, %v151
    %v161 = vshrl.u32 2102212464, %v152
    %v162 = vor.u32 %v160, %v161
    %v163 = vshll.u32 2102212464, %v151
    %v164 = vshrl.u32 920167782, %v152
    %v165 = vor.u32 %v163, %v164
    %v166 = vshll.u32 920167782, %v151
    %v167 = vshrl.u32 1326507024, %v152
    %v168 = vor.u32 %v166, %v167
    %vm169 = vcmp.lt.s32.totalorder %v150, 1
    %vm170 = vcmp.lt.s32.totalorder %v150, 2
    %vm171 = vcmp.lt.s32.totalorder %v150, 3
    %vm172 = vcmp.lt.s32.totalorder %v150, 4
    %v173 = vsel %vm169, %v153, %v156
    %v174 = vsel %vm172, %v162, 2102212464
    %v175 = vsel %vm171, %v159, %v174
    %v176 = vsel %vm170, %v173, %v175
    %v177 = vsel %vm169, %v156, %v159
    %v178 = vsel %vm172, %v165, 920167782
    %v179 = vsel %vm171, %v162, %v178
    %v180 = vsel %vm170, %v177, %v179
    %v181 = vsel %vm169, %v159, %v162
    %v182 = vsel %vm172, %v168, 1326507024
    %v183 = vsel %vm171, %v165, %v182
    %v184 = vsel %vm170, %v181, %v183
    %v185 = vshll.u32 %v145, 8
    %v186 = vmul.u32.u64.compose %v185, %v184
    %v187 = vextract.low.u32 %v186
    %v188 = vextract.high.u32 %v186
    %v189 = vmul.u32.u64.compose %v185, %v180
    %v190 = vextract.low.u32 %v189
    %v191 = vextract.high.u32 %v189
    %v192 = vmul.u32 %v185, %v176
    %v193 = vadd.s32 %v188, %v190
    %vm194 = vc.u32 %v188, %v190
    %v195 = vadd.s32 %v191, 1
    %v196 = vsel %vm194, %v195, %v191
    %v197 = vadd.s32 %v192, %v196
    %v198 = vadd.s32 %v197, 536870912
    %v199 = vshrl.u32 %v198, 30
    %v200 = vshll.u32 %v199, 30
    %v201 = vsub.s32 %v197, %v200
    %vm202 = vcmp.lt.s32.totalorder %v201, 0
    %v203 = vsub.s32 0, %v201
    %v204 = vsel %vm202, %v203, %v201
    %v205 = vclz %v204
    %v206 = vsub.s32 %v205, 2
    %vm207 = vcmp.gt.s32.totalorder 0, %v206
    %v208 = vsel %vm207, 0, %v206
    %v209 = vsub.s32 32, %v208
    %v210 = vshll.u32 %v201, %v208
    %v211 = vshrl.u32 %v193, %v209
    %v212 = vor.u32 %v210, %v211
    %v213 = vsub.s32 4294967266, %v208
    %v214 = vadd.s32 %v213, 127
    %v215 = vshll.u32 %v214, 23
    %v216 = vor.u32 4788187, %v215
    %v217 = vand.u32 2147483647, %v216
    %v219 = vcvt.s32.f32 %v212
    %v220 = vmul.f32 %v219, %v217
    %v221 = vxor.u32 %v220, 2147483648
    %v222 = vsel %vm139, %v221, %v220
    %v223 = vsub.s32 4, %v199
    %v224 = vsel %vm139, %v223, %v199
    %v225 = vsel %vm138, %v131, %v222
    %v226 = vsel %vm138, 0, %v224
    %v227 = vcosq.f32.pop %v225
    %v228 = vsinq.f32.pop %v225
    %vm229 = vweird.f32 %v131
    %v230 = vadd.s32 %v226, 3
    %v231 = vand.u32 %v230, 3
    %vm232 = vcmp.lt.s32.totalorder %v231, 2
    %vm233 = vcmp.eq.s32.totalorder %v231, 0
    %v234 = vxor.u32 %v228, 2147483648
    %v235 = vsel %vm233, %v227, %v234
    %vm236 = vcmp.eq.s32.totalorder %v231, 2
    %v237 = vxor.u32 %v227, 2147483648
    %v238 = vsel %vm236, %v237, %v228
    %v239 = vsel %vm232, %v235, %v238
    %v240 = vsel %vm229, nan, %v239
    %v241 = vand.u32 2147483647, %v132
    %vm242 = vcmp.le.f32.partialorder %v241, 0.7853982
    %vm243 = vcmp.lt.s32.totalorder %v132, 0
    %v244 = vand.u32 %v132, 2139095040
    %v245 = vshrl.u32 %v244, 23
    %v246 = vsub.s32 %v245, 127
    %v247 = vand.u32 2147483647, %v132
    %v248 = vand.u32 %v247, 8388607
    %v249 = vor.u32 %v248, 8388608
    %v250 = vsub.s32 0, %v249
    %v251 = vadd.s32 %v246, 1
    %vm252 = vcmp.gt.s32.totalorder %v251, 0
    %v253 = vsel %vm252, %v251, 0
    %v254 = vshrl.u32 %v253, 5
    %v255 = vand.u32 %v253, 31
    %v256 = vsub.s32 32, %v255
    %v257 = vshrl.u32 683565275, %v256
    %v258 = vshll.u32 683565275, %v255
    %v259 = vshrl.u32 2475754826, %v256
    %v260 = vor.u32 %v258, %v259
    %v261 = vshll.u32 2475754826, %v255
    %v262 = vshrl.u32 2131351028, %v256
    %v263 = vor.u32 %v261, %v262
    %v264 = vshll.u32 2131351028, %v255
    %v265 = vshrl.u32 2102212464, %v256
    %v266 = vor.u32 %v264, %v265
    %v267 = vshll.u32 2102212464, %v255
    %v268 = vshrl.u32 920167782, %v256
    %v269 = vor.u32 %v267, %v268
    %v270 = vshll.u32 920167782, %v255
    %v271 = vshrl.u32 1326507024, %v256
    %v272 = vor.u32 %v270, %v271
    %vm273 = vcmp.lt.s32.totalorder %v254, 1
    %vm274 = vcmp.lt.s32.totalorder %v254, 2
    %vm275 = vcmp.lt.s32.totalorder %v254, 3
    %vm276 = vcmp.lt.s32.totalorder %v254, 4
    %v277 = vsel %vm273, %v257, %v260
    %v278 = vsel %vm276, %v266, 2102212464
    %v279 = vsel %vm275, %v263, %v278
    %v280 = vsel %vm274, %v277, %v279
    %v281 = vsel %vm273, %v260, %v263
    %v282 = vsel %vm276, %v269, 920167782
    %v283 = vsel %vm275, %v266, %v282
    %v284 = vsel %vm274, %v281, %v283
    %v285 = vsel %vm273, %v263, %v266
    %v286 = vsel %vm276, %v272, 1326507024
    %v287 = vsel %vm275, %v269, %v286
    %v288 = vsel %vm274, %v285, %v287
    %v289 = vshll.u32 %v249, 8
    %v290 = vmul.u32.u64.compose %v289, %v288
    %v291 = vextract.low.u32 %v290
    %v292 = vextract.high.u32 %v290
    %v293 = vmul.u32.u64.compose %v289, %v284
    %v294 = vextract.low.u32 %v293
    %v295 = vextract.high.u32 %v293
    %v296 = vmul.u32 %v289, %v280
    %v297 = vadd.s32 %v292, %v294
    %vm298 = vc.u32 %v292, %v294
    %v299 = vadd.s32 %v295, 1
    %v300 = vsel %vm298, %v299, %v295
    %v301 = vadd.s32 %v296, %v300
    %v302 = vadd.s32 %v301, 536870912
    %v303 = vshrl.u32 %v302, 30
    %v304 = vshll.u32 %v303, 30
    %v305 = vsub.s32 %v301, %v304
    %vm306 = vcmp.lt.s32.totalorder %v305, 0
    %v307 = vsub.s32 0, %v305
    %v308 = vsel %vm306, %v307, %v305
    %v309 = vclz %v308
    %v310 = vsub.s32 %v309, 2
    %vm311 = vcmp.gt.s32.totalorder 0, %v310
    %v312 = vsel %vm311, 0, %v310
    %v313 = vsub.s32 32, %v312
    %v314 = vshll.u32 %v305, %v312
    %v315 = vshrl.u32 %v297, %v313
    %v316 = vor.u32 %v314, %v315
    %v317 = vsub.s32 4294967266, %v312
    %v318 = vadd.s32 %v317, 127
    %v319 = vshll.u32 %v318, 23
    %v320 = vor.u32 4788187, %v319
    %v321 = vand.u32 2147483647, %v320
    %v323 = vcvt.s32.f32 %v316
    %v324 = vmul.f32 %v323, %v321
    %v325 = vxor.u32 %v324, 2147483648
    %v326 = vsel %vm243, %v325, %v324
    %v327 = vsub.s32 4, %v303
    %v328 = vsel %vm243, %v327, %v303
    %v329 = vsel %vm242, %v132, %v326
    %v330 = vsel %vm242, 0, %v328
    %v331 = vcosq.f32.pop %v329
    %v332 = vsinq.f32.pop %v329
    %vm333 = vweird.f32 %v132
    %v334 = vadd.s32 %v330, 3
    %v335 = vand.u32 %v334, 3
    %vm336 = vcmp.lt.s32.totalorder %v335, 2
    %vm337 = vcmp.eq.s32.totalorder %v335, 0
    %v338 = vxor.u32 %v332, 2147483648
    %v339 = vsel %vm337, %v331, %v338
    %vm340 = vcmp.eq.s32.totalorder %v335, 2
    %v341 = vxor.u32 %v331, 2147483648
    %v342 = vsel %vm340, %v341, %v332
    %v343 = vsel %vm336, %v339, %v342
    %v344 = vsel %vm333, nan, %v343
    %v345 = vand.u32 2147483647, %v133
    %vm346 = vcmp.le.f32.partialorder %v345, 0.7853982
    %vm347 = vcmp.lt.s32.totalorder %v133, 0
    %v348 = vand.u32 %v133, 2139095040
    %v349 = vshrl.u32 %v348, 23
    %v350 = vsub.s32 %v349, 127
    %v351 = vand.u32 2147483647, %v133
    %v352 = vand.u32 %v351, 8388607
    %v353 = vor.u32 %v352, 8388608
    %v354 = vsub.s32 0, %v353
    %v355 = vadd.s32 %v350, 1
    %vm356 = vcmp.gt.s32.totalorder %v355, 0
    %v357 = vsel %vm356, %v355, 0
    %v358 = vshrl.u32 %v357, 5
    %v359 = vand.u32 %v357, 31
    %v360 = vsub.s32 32, %v359
    %v361 = vshrl.u32 683565275, %v360
    %v362 = vshll.u32 683565275, %v359
    %v363 = vshrl.u32 2475754826, %v360
    %v364 = vor.u32 %v362, %v363
    %v365 = vshll.u32 2475754826, %v359
    %v366 = vshrl.u32 2131351028, %v360
    %v367 = vor.u32 %v365, %v366
    %v368 = vshll.u32 2131351028, %v359
    %v369 = vshrl.u32 2102212464, %v360
    %v370 = vor.u32 %v368, %v369
    %v371 = vshll.u32 2102212464, %v359
    %v372 = vshrl.u32 920167782, %v360
    %v373 = vor.u32 %v371, %v372
    %v374 = vshll.u32 920167782, %v359
    %v375 = vshrl.u32 1326507024, %v360
    %v376 = vor.u32 %v374, %v375
    %vm377 = vcmp.lt.s32.totalorder %v358, 1
    %vm378 = vcmp.lt.s32.totalorder %v358, 2
    %vm379 = vcmp.lt.s32.totalorder %v358, 3
    %vm380 = vcmp.lt.s32.totalorder %v358, 4
    %v381 = vsel %vm377, %v361, %v364
    %v382 = vsel %vm380, %v370, 2102212464
    %v383 = vsel %vm379, %v367, %v382
    %v384 = vsel %vm378, %v381, %v383
    %v385 = vsel %vm377, %v364, %v367
    %v386 = vsel %vm380, %v373, 920167782
    %v387 = vsel %vm379, %v370, %v386
    %v388 = vsel %vm378, %v385, %v387
    %v389 = vsel %vm377, %v367, %v370
    %v390 = vsel %vm380, %v376, 1326507024
    %v391 = vsel %vm379, %v373, %v390
    %v392 = vsel %vm378, %v389, %v391
    %v393 = vshll.u32 %v353, 8
    %v394 = vmul.u32.u64.compose %v393, %v392
    %v395 = vextract.low.u32 %v394
    %v396 = vextract.high.u32 %v394
    %v397 = vmul.u32.u64.compose %v393, %v388
    %v398 = vextract.low.u32 %v397
    %v399 = vextract.high.u32 %v397
    %v400 = vmul.u32 %v393, %v384
    %v401 = vadd.s32 %v396, %v398
    %vm402 = vc.u32 %v396, %v398
    %v403 = vadd.s32 %v399, 1
    %v404 = vsel %vm402, %v403, %v399
    %v405 = vadd.s32 %v400, %v404
    %v406 = vadd.s32 %v405, 536870912
    %v407 = vshrl.u32 %v406, 30
    %v408 = vshll.u32 %v407, 30
    %v409 = vsub.s32 %v405, %v408
    %vm410 = vcmp.lt.s32.totalorder %v409, 0
    %v411 = vsub.s32 0, %v409
    %v412 = vsel %vm410, %v411, %v409
    %v413 = vclz %v412
    %v414 = vsub.s32 %v413, 2
    %vm415 = vcmp.gt.s32.totalorder 0, %v414
    %v416 = vsel %vm415, 0, %v414
    %v417 = vsub.s32 32, %v416
    %v418 = vshll.u32 %v409, %v416
    %v419 = vshrl.u32 %v401, %v417
    %v420 = vor.u32 %v418, %v419
    %v421 = vsub.s32 4294967266, %v416
    %v422 = vadd.s32 %v421, 127
    %v423 = vshll.u32 %v422, 23
    %v424 = vor.u32 4788187, %v423
    %v425 = vand.u32 2147483647, %v424
    %v427 = vcvt.s32.f32 %v420
    %v428 = vmul.f32 %v427, %v425
    %v429 = vxor.u32 %v428, 2147483648
    %v430 = vsel %vm347, %v429, %v428
    %v431 = vsub.s32 4, %v407
    %v432 = vsel %vm347, %v431, %v407
    %v433 = vsel %vm346, %v133, %v430
    %v434 = vsel %vm346, 0, %v432
    %v435 = vcosq.f32.pop %v433
    %v436 = vsinq.f32.pop %v433
    %vm437 = vweird.f32 %v133
    %v438 = vadd.s32 %v434, 3
    %v439 = vand.u32 %v438, 3
    %vm440 = vcmp.lt.s32.totalorder %v439, 2
    %vm441 = vcmp.eq.s32.totalorder %v439, 0
    %v442 = vxor.u32 %v436, 2147483648
    %v443 = vsel %vm441, %v435, %v442
    %vm444 = vcmp.eq.s32.totalorder %v439, 2
    %v445 = vxor.u32 %v435, 2147483648
    %v446 = vsel %vm444, %v445, %v436
    %v447 = vsel %vm440, %v443, %v446
    %v448 = vsel %vm437, nan, %v447
    %v449 = vand.u32 2147483647, %v134
    %vm450 = vcmp.le.f32.partialorder %v449, 0.7853982
    %vm451 = vcmp.lt.s32.totalorder %v134, 0
    %v452 = vand.u32 %v134, 2139095040
    %v453 = vshrl.u32 %v452, 23
    %v454 = vsub.s32 %v453, 127
    %v455 = vand.u32 2147483647, %v134
    %v456 = vand.u32 %v455, 8388607
    %v457 = vor.u32 %v456, 8388608
    %v458 = vsub.s32 0, %v457
    %v459 = vadd.s32 %v454, 1
    %vm460 = vcmp.gt.s32.totalorder %v459, 0
    %v461 = vsel %vm460, %v459, 0
    %v462 = vshrl.u32 %v461, 5
    %v463 = vand.u32 %v461, 31
    %v464 = vsub.s32 32, %v463
    %v465 = vshrl.u32 683565275, %v464
    %v466 = vshll.u32 683565275, %v463
    %v467 = vshrl.u32 2475754826, %v464
    %v468 = vor.u32 %v466, %v467
    %v469 = vshll.u32 2475754826, %v463
    %v470 = vshrl.u32 2131351028, %v464
    %v471 = vor.u32 %v469, %v470
    %v472 = vshll.u32 2131351028, %v463
    %v473 = vshrl.u32 2102212464, %v464
    %v474 = vor.u32 %v472, %v473
    %v475 = vshll.u32 2102212464, %v463
    %v476 = vshrl.u32 920167782, %v464
    %v477 = vor.u32 %v475, %v476
    %v478 = vshll.u32 920167782, %v463
    %v479 = vshrl.u32 1326507024, %v464
    %v480 = vor.u32 %v478, %v479
    %vm481 = vcmp.lt.s32.totalorder %v462, 1
    %vm482 = vcmp.lt.s32.totalorder %v462, 2
    %vm483 = vcmp.lt.s32.totalorder %v462, 3
    %vm484 = vcmp.lt.s32.totalorder %v462, 4
    %v485 = vsel %vm481, %v465, %v468
    %v486 = vsel %vm484, %v474, 2102212464
    %v487 = vsel %vm483, %v471, %v486
    %v488 = vsel %vm482, %v485, %v487
    %v489 = vsel %vm481, %v468, %v471
    %v490 = vsel %vm484, %v477, 920167782
    %v491 = vsel %vm483, %v474, %v490
    %v492 = vsel %vm482, %v489, %v491
    %v493 = vsel %vm481, %v471, %v474
    %v494 = vsel %vm484, %v480, 1326507024
    %v495 = vsel %vm483, %v477, %v494
    %v496 = vsel %vm482, %v493, %v495
    %v497 = vshll.u32 %v457, 8
    %v498 = vmul.u32.u64.compose %v497, %v496
    %v499 = vextract.low.u32 %v498
    %v500 = vextract.high.u32 %v498
    %v501 = vmul.u32.u64.compose %v497, %v492
    %v502 = vextract.low.u32 %v501
    %v503 = vextract.high.u32 %v501
    %v504 = vmul.u32 %v497, %v488
    %v505 = vadd.s32 %v500, %v502
    %vm506 = vc.u32 %v500, %v502
    %v507 = vadd.s32 %v503, 1
    %v508 = vsel %vm506, %v507, %v503
    %v509 = vadd.s32 %v504, %v508
    %v510 = vadd.s32 %v509, 536870912
    %v511 = vshrl.u32 %v510, 30
    %v512 = vshll.u32 %v511, 30
    %v513 = vsub.s32 %v509, %v512
    %vm514 = vcmp.lt.s32.totalorder %v513, 0
    %v515 = vsub.s32 0, %v513
    %v516 = vsel %vm514, %v515, %v513
    %v517 = vclz %v516
    %v518 = vsub.s32 %v517, 2
    %vm519 = vcmp.gt.s32.totalorder 0, %v518
    %v520 = vsel %vm519, 0, %v518
    %v521 = vsub.s32 32, %v520
    %v522 = vshll.u32 %v513, %v520
    %v523 = vshrl.u32 %v505, %v521
    %v524 = vor.u32 %v522, %v523
    %v525 = vsub.s32 4294967266, %v520
    %v526 = vadd.s32 %v525, 127
    %v527 = vshll.u32 %v526, 23
    %v528 = vor.u32 4788187, %v527
    %v529 = vand.u32 2147483647, %v528
    %v531 = vcvt.s32.f32 %v524
    %v532 = vmul.f32 %v531, %v529
    %v533 = vxor.u32 %v532, 2147483648
    %v534 = vsel %vm451, %v533, %v532
    %v535 = vsub.s32 4, %v511
    %v536 = vsel %vm451, %v535, %v511
    %v537 = vsel %vm450, %v134, %v534
    %v538 = vsel %vm450, 0, %v536
    %v539 = vcosq.f32.pop %v537
    %v540 = vsinq.f32.pop %v537
    %vm541 = vweird.f32 %v134
    %v542 = vadd.s32 %v538, 3
    %v543 = vand.u32 %v542, 3
    %vm544 = vcmp.lt.s32.totalorder %v543, 2
    %vm545 = vcmp.eq.s32.totalorder %v543, 0
    %v546 = vxor.u32 %v540, 2147483648
    %v547 = vsel %vm545, %v539, %v546
    %vm548 = vcmp.eq.s32.totalorder %v543, 2
    %v549 = vxor.u32 %v539, 2147483648
    %v550 = vsel %vm548, %v549, %v540
    %v551 = vsel %vm544, %v547, %v550
    %v552 = vsel %vm541, nan, %v551
    %v553 = vand.u32 2147483647, %v131
    %vm554 = vcmp.le.f32.partialorder %v553, 0.7853982
    %vm555 = vcmp.lt.s32.totalorder %v131, 0
    %v556 = vand.u32 %v131, 2139095040
    %v557 = vshrl.u32 %v556, 23
    %v558 = vsub.s32 %v557, 127
    %v559 = vand.u32 2147483647, %v131
    %v560 = vand.u32 %v559, 8388607
    %v561 = vor.u32 %v560, 8388608
    %v562 = vsub.s32 0, %v561
    %v563 = vadd.s32 %v558, 1
    %vm564 = vcmp.gt.s32.totalorder %v563, 0
    %v565 = vsel %vm564, %v563, 0
    %v566 = vshrl.u32 %v565, 5
    %v567 = vand.u32 %v565, 31
    %v568 = vsub.s32 32, %v567
    %v569 = vshrl.u32 683565275, %v568
    %v570 = vshll.u32 683565275, %v567
    %v571 = vshrl.u32 2475754826, %v568
    %v572 = vor.u32 %v570, %v571
    %v573 = vshll.u32 2475754826, %v567
    %v574 = vshrl.u32 2131351028, %v568
    %v575 = vor.u32 %v573, %v574
    %v576 = vshll.u32 2131351028, %v567
    %v577 = vshrl.u32 2102212464, %v568
    %v578 = vor.u32 %v576, %v577
    %v579 = vshll.u32 2102212464, %v567
    %v580 = vshrl.u32 920167782, %v568
    %v581 = vor.u32 %v579, %v580
    %v582 = vshll.u32 920167782, %v567
    %v583 = vshrl.u32 1326507024, %v568
    %v584 = vor.u32 %v582, %v583
    %vm585 = vcmp.lt.s32.totalorder %v566, 1
    %vm586 = vcmp.lt.s32.totalorder %v566, 2
    %vm587 = vcmp.lt.s32.totalorder %v566, 3
    %vm588 = vcmp.lt.s32.totalorder %v566, 4
    %v589 = vsel %vm585, %v569, %v572
    %v590 = vsel %vm588, %v578, 2102212464
    %v591 = vsel %vm587, %v575, %v590
    %v592 = vsel %vm586, %v589, %v591
    %v593 = vsel %vm585, %v572, %v575
    %v594 = vsel %vm588, %v581, 920167782
    %v595 = vsel %vm587, %v578, %v594
    %v596 = vsel %vm586, %v593, %v595
    %v597 = vsel %vm585, %v575, %v578
    %v598 = vsel %vm588, %v584, 1326507024
    %v599 = vsel %vm587, %v581, %v598
    %v600 = vsel %vm586, %v597, %v599
    %v601 = vshll.u32 %v561, 8
    %v602 = vmul.u32.u64.compose %v601, %v600
    %v603 = vextract.low.u32 %v602
    %v604 = vextract.high.u32 %v602
    %v605 = vmul.u32.u64.compose %v601, %v596
    %v606 = vextract.low.u32 %v605
    %v607 = vextract.high.u32 %v605
    %v608 = vmul.u32 %v601, %v592
    %v609 = vadd.s32 %v604, %v606
    %vm610 = vc.u32 %v604, %v606
    %v611 = vadd.s32 %v607, 1
    %v612 = vsel %vm610, %v611, %v607
    %v613 = vadd.s32 %v608, %v612
    %v614 = vadd.s32 %v613, 536870912
    %v615 = vshrl.u32 %v614, 30
    %v616 = vshll.u32 %v615, 30
    %v617 = vsub.s32 %v613, %v616
    %vm618 = vcmp.lt.s32.totalorder %v617, 0
    %v619 = vsub.s32 0, %v617
    %v620 = vsel %vm618, %v619, %v617
    %v621 = vclz %v620
    %v622 = vsub.s32 %v621, 2
    %vm623 = vcmp.gt.s32.totalorder 0, %v622
    %v624 = vsel %vm623, 0, %v622
    %v625 = vsub.s32 32, %v624
    %v626 = vshll.u32 %v617, %v624
    %v627 = vshrl.u32 %v609, %v625
    %v628 = vor.u32 %v626, %v627
    %v629 = vsub.s32 4294967266, %v624
    %v630 = vadd.s32 %v629, 127
    %v631 = vshll.u32 %v630, 23
    %v632 = vor.u32 4788187, %v631
    %v633 = vand.u32 2147483647, %v632
    %v635 = vcvt.s32.f32 %v628
    %v636 = vmul.f32 %v635, %v633
    %v637 = vxor.u32 %v636, 2147483648
    %v638 = vsel %vm555, %v637, %v636
    %v639 = vsub.s32 4, %v615
    %v640 = vsel %vm555, %v639, %v615
    %v641 = vsel %vm554, %v131, %v638
    %v642 = vsel %vm554, 0, %v640
    %v643 = vcosq.f32.pop %v641
    %v644 = vsinq.f32.pop %v641
    %vm645 = vweird.f32 %v131
    %v646 = vand.u32 %v642, 3
    %vm647 = vcmp.lt.s32.totalorder %v646, 2
    %vm648 = vcmp.eq.s32.totalorder %v646, 0
    %v649 = vxor.u32 %v644, 2147483648
    %v650 = vsel %vm648, %v643, %v649
    %vm651 = vcmp.eq.s32.totalorder %v646, 2
    %v652 = vxor.u32 %v643, 2147483648
    %v653 = vsel %vm651, %v652, %v644
    %v654 = vsel %vm647, %v650, %v653
    %v655 = vsel %vm645, nan, %v654
    %v656 = vand.u32 2147483647, %v132
    %vm657 = vcmp.le.f32.partialorder %v656, 0.7853982
    %vm658 = vcmp.lt.s32.totalorder %v132, 0
    %v659 = vand.u32 %v132, 2139095040
    %v660 = vshrl.u32 %v659, 23
    %v661 = vsub.s32 %v660, 127
    %v662 = vand.u32 2147483647, %v132
    %v663 = vand.u32 %v662, 8388607
    %v664 = vor.u32 %v663, 8388608
    %v665 = vsub.s32 0, %v664
    %v666 = vadd.s32 %v661, 1
    %vm667 = vcmp.gt.s32.totalorder %v666, 0
    %v668 = vsel %vm667, %v666, 0
    %v669 = vshrl.u32 %v668, 5
    %v670 = vand.u32 %v668, 31
    %v671 = vsub.s32 32, %v670
    %v672 = vshrl.u32 683565275, %v671
    %v673 = vshll.u32 683565275, %v670
    %v674 = vshrl.u32 2475754826, %v671
    %v675 = vor.u32 %v673, %v674
    %v676 = vshll.u32 2475754826, %v670
    %v677 = vshrl.u32 2131351028, %v671
    %v678 = vor.u32 %v676, %v677
    %v679 = vshll.u32 2131351028, %v670
    %v680 = vshrl.u32 2102212464, %v671
    %v681 = vor.u32 %v679, %v680
    %v682 = vshll.u32 2102212464, %v670
    %v683 = vshrl.u32 920167782, %v671
    %v684 = vor.u32 %v682, %v683
    %v685 = vshll.u32 920167782, %v670
    %v686 = vshrl.u32 1326507024, %v671
    %v687 = vor.u32 %v685, %v686
    %vm688 = vcmp.lt.s32.totalorder %v669, 1
    %vm689 = vcmp.lt.s32.totalorder %v669, 2
    %vm690 = vcmp.lt.s32.totalorder %v669, 3
    %vm691 = vcmp.lt.s32.totalorder %v669, 4
    %v692 = vsel %vm688, %v672, %v675
    %v693 = vsel %vm691, %v681, 2102212464
    %v694 = vsel %vm690, %v678, %v693
    %v695 = vsel %vm689, %v692, %v694
    %v696 = vsel %vm688, %v675, %v678
    %v697 = vsel %vm691, %v684, 920167782
    %v698 = vsel %vm690, %v681, %v697
    %v699 = vsel %vm689, %v696, %v698
    %v700 = vsel %vm688, %v678, %v681
    %v701 = vsel %vm691, %v687, 1326507024
    %v702 = vsel %vm690, %v684, %v701
    %v703 = vsel %vm689, %v700, %v702
    %v704 = vshll.u32 %v664, 8
    %v705 = vmul.u32.u64.compose %v704, %v703
    %v706 = vextract.low.u32 %v705
    %v707 = vextract.high.u32 %v705
    %v708 = vmul.u32.u64.compose %v704, %v699
    %v709 = vextract.low.u32 %v708
    %v710 = vextract.high.u32 %v708
    %v711 = vmul.u32 %v704, %v695
    %v712 = vadd.s32 %v707, %v709
    %vm713 = vc.u32 %v707, %v709
    %v714 = vadd.s32 %v710, 1
    %v715 = vsel %vm713, %v714, %v710
    %v716 = vadd.s32 %v711, %v715
    %v717 = vadd.s32 %v716, 536870912
    %v718 = vshrl.u32 %v717, 30
    %v719 = vshll.u32 %v718, 30
    %v720 = vsub.s32 %v716, %v719
    %vm721 = vcmp.lt.s32.totalorder %v720, 0
    %v722 = vsub.s32 0, %v720
    %v723 = vsel %vm721, %v722, %v720
    %v724 = vclz %v723
    %v725 = vsub.s32 %v724, 2
    %vm726 = vcmp.gt.s32.totalorder 0, %v725
    %v727 = vsel %vm726, 0, %v725
    %v728 = vsub.s32 32, %v727
    %v729 = vshll.u32 %v720, %v727
    %v730 = vshrl.u32 %v712, %v728
    %v731 = vor.u32 %v729, %v730
    %v732 = vsub.s32 4294967266, %v727
    %v733 = vadd.s32 %v732, 127
    %v734 = vshll.u32 %v733, 23
    %v735 = vor.u32 4788187, %v734
    %v736 = vand.u32 2147483647, %v735
    %v738 = vcvt.s32.f32 %v731
    %v739 = vmul.f32 %v738, %v736
    %v740 = vxor.u32 %v739, 2147483648
    %v741 = vsel %vm658, %v740, %v739
    %v742 = vsub.s32 4, %v718
    %v743 = vsel %vm658, %v742, %v718
    %v744 = vsel %vm657, %v132, %v741
    %v745 = vsel %vm657, 0, %v743
    %v746 = vcosq.f32.pop %v744
    %v747 = vsinq.f32.pop %v744
    %vm748 = vweird.f32 %v132
    %v749 = vand.u32 %v745, 3
    %vm750 = vcmp.lt.s32.totalorder %v749, 2
    %vm751 = vcmp.eq.s32.totalorder %v749, 0
    %v752 = vxor.u32 %v747, 2147483648
    %v753 = vsel %vm751, %v746, %v752
    %vm754 = vcmp.eq.s32.totalorder %v749, 2
    %v755 = vxor.u32 %v746, 2147483648
    %v756 = vsel %vm754, %v755, %v747
    %v757 = vsel %vm750, %v753, %v756
    %v758 = vsel %vm748, nan, %v757
    %v759 = vand.u32 2147483647, %v133
    %vm760 = vcmp.le.f32.partialorder %v759, 0.7853982
    %vm761 = vcmp.lt.s32.totalorder %v133, 0
    %v762 = vand.u32 %v133, 2139095040
    %v763 = vshrl.u32 %v762, 23
    %v764 = vsub.s32 %v763, 127
    %v765 = vand.u32 2147483647, %v133
    %v766 = vand.u32 %v765, 8388607
    %v767 = vor.u32 %v766, 8388608
    %v768 = vsub.s32 0, %v767
    %v769 = vadd.s32 %v764, 1
    %vm770 = vcmp.gt.s32.totalorder %v769, 0
    %v771 = vsel %vm770, %v769, 0
    %v772 = vshrl.u32 %v771, 5
    %v773 = vand.u32 %v771, 31
    %v774 = vsub.s32 32, %v773
    %v775 = vshrl.u32 683565275, %v774
    %v776 = vshll.u32 683565275, %v773
    %v777 = vshrl.u32 2475754826, %v774
    %v778 = vor.u32 %v776, %v777
    %v779 = vshll.u32 2475754826, %v773
    %v780 = vshrl.u32 2131351028, %v774
    %v781 = vor.u32 %v779, %v780
    %v782 = vshll.u32 2131351028, %v773
    %v783 = vshrl.u32 2102212464, %v774
    %v784 = vor.u32 %v782, %v783
    %v785 = vshll.u32 2102212464, %v773
    %v786 = vshrl.u32 920167782, %v774
    %v787 = vor.u32 %v785, %v786
    %v788 = vshll.u32 920167782, %v773
    %v789 = vshrl.u32 1326507024, %v774
    %v790 = vor.u32 %v788, %v789
    %vm791 = vcmp.lt.s32.totalorder %v772, 1
    %vm792 = vcmp.lt.s32.totalorder %v772, 2
    %vm793 = vcmp.lt.s32.totalorder %v772, 3
    %vm794 = vcmp.lt.s32.totalorder %v772, 4
    %v795 = vsel %vm791, %v775, %v778
    %v796 = vsel %vm794, %v784, 2102212464
    %v797 = vsel %vm793, %v781, %v796
    %v798 = vsel %vm792, %v795, %v797
    %v799 = vsel %vm791, %v778, %v781
    %v800 = vsel %vm794, %v787, 920167782
    %v801 = vsel %vm793, %v784, %v800
    %v802 = vsel %vm792, %v799, %v801
    %v803 = vsel %vm791, %v781, %v784
    %v804 = vsel %vm794, %v790, 1326507024
    %v805 = vsel %vm793, %v787, %v804
    %v806 = vsel %vm792, %v803, %v805
    %v807 = vshll.u32 %v767, 8
    %v808 = vmul.u32.u64.compose %v807, %v806
    %v809 = vextract.low.u32 %v808
    %v810 = vextract.high.u32 %v808
    %v811 = vmul.u32.u64.compose %v807, %v802
    %v812 = vextract.low.u32 %v811
    %v813 = vextract.high.u32 %v811
    %v814 = vmul.u32 %v807, %v798
    %v815 = vadd.s32 %v810, %v812
    %vm816 = vc.u32 %v810, %v812
    %v817 = vadd.s32 %v813, 1
    %v818 = vsel %vm816, %v817, %v813
    %v819 = vadd.s32 %v814, %v818
    %v820 = vadd.s32 %v819, 536870912
    %v821 = vshrl.u32 %v820, 30
    %v822 = vshll.u32 %v821, 30
    %v823 = vsub.s32 %v819, %v822
    %vm824 = vcmp.lt.s32.totalorder %v823, 0
    %v825 = vsub.s32 0, %v823
    %v826 = vsel %vm824, %v825, %v823
    %v827 = vclz %v826
    %v828 = vsub.s32 %v827, 2
    %vm829 = vcmp.gt.s32.totalorder 0, %v828
    %v830 = vsel %vm829, 0, %v828
    %v831 = vsub.s32 32, %v830
    %v832 = vshll.u32 %v823, %v830
    %v833 = vshrl.u32 %v815, %v831
    %v834 = vor.u32 %v832, %v833
    %v835 = vsub.s32 4294967266, %v830
    %v836 = vadd.s32 %v835, 127
    %v837 = vshll.u32 %v836, 23
    %v838 = vor.u32 4788187, %v837
    %v839 = vand.u32 2147483647, %v838
    %v841 = vcvt.s32.f32 %v834
    %v842 = vmul.f32 %v841, %v839
    %v843 = vxor.u32 %v842, 2147483648
    %v844 = vsel %vm761, %v843, %v842
    %v845 = vsub.s32 4, %v821
    %v846 = vsel %vm761, %v845, %v821
    %v847 = vsel %vm760, %v133, %v844
    %v848 = vsel %vm760, 0, %v846
    %v849 = vcosq.f32.pop %v847
    %v850 = vsinq.f32.pop %v847
    %vm851 = vweird.f32 %v133
    %v852 = vand.u32 %v848, 3
    %vm853 = vcmp.lt.s32.totalorder %v852, 2
    %vm854 = vcmp.eq.s32.totalorder %v852, 0
    %v855 = vxor.u32 %v850, 2147483648
    %v856 = vsel %vm854, %v849, %v855
    %vm857 = vcmp.eq.s32.totalorder %v852, 2
    %v858 = vxor.u32 %v849, 2147483648
    %v859 = vsel %vm857, %v858, %v850
    %v860 = vsel %vm853, %v856, %v859
    %v861 = vsel %vm851, nan, %v860
    %v862 = vand.u32 2147483647, %v134
    %vm863 = vcmp.le.f32.partialorder %v862, 0.7853982
    %vm864 = vcmp.lt.s32.totalorder %v134, 0
    %v865 = vand.u32 %v134, 2139095040
    %v866 = vshrl.u32 %v865, 23
    %v867 = vsub.s32 %v866, 127
    %v868 = vand.u32 2147483647, %v134
    %v869 = vand.u32 %v868, 8388607
    %v870 = vor.u32 %v869, 8388608
    %v871 = vsub.s32 0, %v870
    %v872 = vadd.s32 %v867, 1
    %vm873 = vcmp.gt.s32.totalorder %v872, 0
    %v874 = vsel %vm873, %v872, 0
    %v875 = vshrl.u32 %v874, 5
    %v876 = vand.u32 %v874, 31
    %v877 = vsub.s32 32, %v876
    %v878 = vshrl.u32 683565275, %v877
    %v879 = vshll.u32 683565275, %v876
    %v880 = vshrl.u32 2475754826, %v877
    %v881 = vor.u32 %v879, %v880
    %v882 = vshll.u32 2475754826, %v876
    %v883 = vshrl.u32 2131351028, %v877
    %v884 = vor.u32 %v882, %v883
    %v885 = vshll.u32 2131351028, %v876
    %v886 = vshrl.u32 2102212464, %v877
    %v887 = vor.u32 %v885, %v886
    %v888 = vshll.u32 2102212464, %v876
    %v889 = vshrl.u32 920167782, %v877
    %v890 = vor.u32 %v888, %v889
    %v891 = vshll.u32 920167782, %v876
    %v892 = vshrl.u32 1326507024, %v877
    %v893 = vor.u32 %v891, %v892
    %vm894 = vcmp.lt.s32.totalorder %v875, 1
    %vm895 = vcmp.lt.s32.totalorder %v875, 2
    %vm896 = vcmp.lt.s32.totalorder %v875, 3
    %vm897 = vcmp.lt.s32.totalorder %v875, 4
    %v898 = vsel %vm894, %v878, %v881
    %v899 = vsel %vm897, %v887, 2102212464
    %v900 = vsel %vm896, %v884, %v899
    %v901 = vsel %vm895, %v898, %v900
    %v902 = vsel %vm894, %v881, %v884
    %v903 = vsel %vm897, %v890, 920167782
    %v904 = vsel %vm896, %v887, %v903
    %v905 = vsel %vm895, %v902, %v904
    %v906 = vsel %vm894, %v884, %v887
    %v907 = vsel %vm897, %v893, 1326507024
    %v908 = vsel %vm896, %v890, %v907
    %v909 = vsel %vm895, %v906, %v908
    %v910 = vshll.u32 %v870, 8
    %v911 = vmul.u32.u64.compose %v910, %v909
    %v912 = vextract.low.u32 %v911
    %v913 = vextract.high.u32 %v911
    %v914 = vmul.u32.u64.compose %v910, %v905
    %v915 = vextract.low.u32 %v914
    %v916 = vextract.high.u32 %v914
    %v917 = vmul.u32 %v910, %v901
    %v918 = vadd.s32 %v913, %v915
    %vm919 = vc.u32 %v913, %v915
    %v920 = vadd.s32 %v916, 1
    %v921 = vsel %vm919, %v920, %v916
    %v922 = vadd.s32 %v917, %v921
    %v923 = vadd.s32 %v922, 536870912
    %v924 = vshrl.u32 %v923, 30
    %v925 = vshll.u32 %v924, 30
    %v926 = vsub.s32 %v922, %v925
    %vm927 = vcmp.lt.s32.totalorder %v926, 0
    %v928 = vsub.s32 0, %v926
    %v929 = vsel %vm927, %v928, %v926
    %v930 = vclz %v929
    %v931 = vsub.s32 %v930, 2
    %vm932 = vcmp.gt.s32.totalorder 0, %v931
    %v933 = vsel %vm932, 0, %v931
    %v934 = vsub.s32 32, %v933
    %v935 = vshll.u32 %v926, %v933
    %v936 = vshrl.u32 %v918, %v934
    %v937 = vor.u32 %v935, %v936
    %v938 = vsub.s32 4294967266, %v933
    %v939 = vadd.s32 %v938, 127
    %v940 = vshll.u32 %v939, 23
    %v941 = vor.u32 4788187, %v940
    %v942 = vand.u32 2147483647, %v941
    %v944 = vcvt.s32.f32 %v937
    %v945 = vmul.f32 %v944, %v942
    %v946 = vxor.u32 %v945, 2147483648
    %v947 = vsel %vm864, %v946, %v945
    %v948 = vsub.s32 4, %v924
    %v949 = vsel %vm864, %v948, %v924
    %v950 = vsel %vm863, %v134, %v947
    %v951 = vsel %vm863, 0, %v949
    %v952 = vcosq.f32.pop %v950
    %v953 = vsinq.f32.pop %v950
    %vm954 = vweird.f32 %v134
    %v955 = vand.u32 %v951, 3
    %vm956 = vcmp.lt.s32.totalorder %v955, 2
    %vm957 = vcmp.eq.s32.totalorder %v955, 0
    %v958 = vxor.u32 %v953, 2147483648
    %v959 = vsel %vm957, %v952, %v958
    %vm960 = vcmp.eq.s32.totalorder %v955, 2
    %v961 = vxor.u32 %v952, 2147483648
    %v962 = vsel %vm960, %v961, %v953
    %v963 = vsel %vm956, %v959, %v962
    %v964 = vsel %vm954, nan, %v963
    %v965 = vsel %vm136, 1, 0
    %v966 = vlaneseq
    %v967 = vshrl.u32 %v966, 7
    %v968 = vsub.s32 0, %v967
    %v969 = vrot.slane %v965, %v968
    %v970 = vlaneseq
    %v971 = vshrl.u32 %v970, 7
    %v972 = vsub.s32 1, %v971
    %v973 = vrot.slane %v965, %v972
    %vm974 = vcmp.eq.s32.totalorder %v969, 1
    %vm975 = vcmp.eq.s32.totalorder %v973, 1
    %v976 = vsel %vm974, %v240, %v655
    %v977 = vsel %vm975, %v344, %v758
    %v978 = vsel %vm974, %v448, %v861
    %v979 = vsel %vm975, %v552, %v964
    %984 = vrot.lane.b32.xlu0 %v976, 16
    %v985 = vpop.permute.xlu0 %984
    %986 = vrot.lane.b32.xlu0 %v977, 16
    %v987 = vpop.permute.xlu0 %986
    %988 = vrot.lane.b32.xlu0 %v978, 16
    %v989 = vpop.permute.xlu0 %988
    %990 = vrot.lane.b32.xlu0 %v979, 16
    %v991 = vpop.permute.xlu0 %990
    %v992 = vsel %vm98, %v985, %v987
    %v993 = vsel %vm98, %v989, %v991
    %v998 = vsel %vm98, %v52, %v985
    %v999 = vsel %vm98, %v53, %v989
    %1000 = vst [vmem:[#allocation8] sm:$0xff] %v998
    %1001 = vst.msk [vmem:[#allocation8 + $0x8] sm:$0xff] %vm110, %v992
    %1002 = vst [vmem:[#allocation8 + $0x10] sm:$0xff] %v999
    %1003 = vst.msk [vmem:[#allocation8 + $0x18] sm:$0xff] %vm110, %v993
    // Predicated region
    $region26: #{tpu_custom_call.1} parent=1 // pred_check
      _
    $region27: #{tpu_custom_call.1} parent=1 // pred_check_branch
      %1005 = sbr.rel (0) target = $region29
    $region28: #{tpu_custom_call.1} parent=1 // pred_region
      %s1007 = ssub.s32 512, 512
      %1008 = vsyncadd [#allocation4], %s1007
      %s1009 = sshll.u32 [#allocation8], 4
      %s1010 = int_to_ptr.vmem [resolvable:$true] %s1009
      %1015 = dma.vmem_to_hbm [thread:$0]  %s1010, 512, %s3, [#allocation4], 256, 256, 16
    $region29: #{tpu_custom_call.1} parent=1 // pred_fallthru
      _
    // Predicated region
    $region30: #{tpu_custom_call.1} parent=1 // pred_check
      _
    $region31: #{tpu_custom_call.1} parent=1 // pred_check_branch
      %1017 = sbr.rel (0) target = $region33
    $region32: #{tpu_custom_call.1} parent=1 // pred_region
      %1018 = dma.done [#allocation4], 512
    $region33: #{tpu_custom_call.1} parent=1 // pred_fallthru
      _
    %1019 = vsyncpa [#allocation3], 1
    %1020 = vsyncpa [#allocation6], 1
    %1021 = vsyncpa [#allocation4], 1

</llo_original>
